<compile_context>
chip_gen: v6e
topology: v6e:2x2x1
jax: 0.10.0
libtpu: 0.0.40
codegen_flags: <defaults>
</compile_context>

<pallas_src>
import functools

import numpy as np
import jax
import jax.numpy as jnp
from jax import lax
from jax.experimental import pallas as pl
from jax.experimental.pallas import tpu as pltpu


_VMEM_LIMIT = 32 * 1024 * 1024  # raises v5e's 16 MiB default; <= 64 MiB physical on v7x


def _tile(n, t_max):
    """Largest tile <= t_max that divides n (inputs here are 128-aligned)."""
    t = min(n, t_max)
    while n % t:
        t //= 2
    return t


def _tpu_generation():
    """Best-effort TPU generation (0 if unknown); only used for tuning knobs."""
    try:
        kind = jax.devices()[0].device_kind.lower()
    except Exception:
        return 0
    for g in (7, 6, 5, 4, 3, 2):
        if "v%d" % g in kind:
            return g
    return 0


# --------------------------------------------------------------------------
# Tiled matmul kernel (QKV projection and output projection).
# --------------------------------------------------------------------------
def _matmul_kernel(x_ref, w_ref, o_ref, acc_ref):
    @pl.when(pl.program_id(2) == 0)
    def _init():
        acc_ref[...] = jnp.zeros(acc_ref.shape, acc_ref.dtype)

    acc_ref[...] += jnp.dot(x_ref[...], w_ref[...],
                            preferred_element_type=jnp.float32)

    @pl.when(pl.program_id(2) == pl.num_programs(2) - 1)
    def _finalize():
        o_ref[...] = acc_ref[...].astype(o_ref.dtype)


def pallas_matmul(x, w, out_dtype=jnp.float32, tm=256, tn=256, tk=512):
    M, K = x.shape
    K2, N = w.shape
    assert K == K2
    tm, tn, tk = _tile(M, tm), _tile(N, tn), _tile(K, tk)
    # v7x megacore: make sure the 'parallel' part of the grid has >= 2 steps
    # so both TensorCores get work (only fires for tiny shapes, no-op otherwise).
    while (M // tm) * (N // tn) < 2 and tm % 16 == 0 and tm > 8:
        tm //= 2
    return pl.pallas_call(
        _matmul_kernel,
        out_shape=jax.ShapeDtypeStruct((M, N), out_dtype),
        grid_spec=pltpu.PrefetchScalarGridSpec(
            num_scalar_prefetch=0,
            grid=(M // tm, N // tn, K // tk),
            in_specs=[pl.BlockSpec((tm, tk), lambda i, j, k: (i, k)),
                      pl.BlockSpec((tk, tn), lambda i, j, k: (k, j))],
            out_specs=pl.BlockSpec((tm, tn), lambda i, j, k: (i, j)),
            scratch_shapes=[pltpu.VMEM((tm, tn), jnp.float32)]),
        compiler_params=pltpu.CompilerParams(
            dimension_semantics=("parallel", "parallel", "arbitrary"),
            vmem_limit_bytes=_VMEM_LIMIT),
    )(x, w)


# --------------------------------------------------------------------------
# Prep kernel: rms_norm + rotary for q/k (attn_scale folded into q), lambda
# mix of v/ve.  Runs once per (time tile, head); the flash kernel then only
# does matmuls + online softmax.
# --------------------------------------------------------------------------
def _prep_kernel(lam_ref, *refs, attn_scale, eps, has_ve):
    if has_ve:
        (q_ref, k_ref, v_ref, ve_ref, cos_ref, sin_ref,
         qn_ref, kn_ref, vm_ref) = refs
    else:
        (q_ref, k_ref, v_ref, cos_ref, sin_ref,
         qn_ref, kn_ref, vm_ref) = refs
        ve_ref = None

    D = q_ref.shape[-1]
    cos = cos_ref[...]
    sin = sin_ref[...]

    def rms_rope(a):
        # rms_norm over head_dim, then rotary via rotate-half (XLU roll, no concat).
        ms = jnp.mean(a * a, axis=-1, keepdims=True)
        a = a * lax.rsqrt(ms + eps)
        return a * cos + pltpu.roll(a, D // 2, axis=1) * sin

    q = q_ref[...].astype(jnp.float32)
    k = k_ref[...].astype(jnp.float32)
    # attn_scale folded into q once here, instead of on every (tq, tk) score tile.
    qn_ref[...] = (rms_rope(q) * attn_scale).astype(qn_ref.dtype)
    kn_ref[...] = rms_rope(k).astype(kn_ref.dtype)

    v = v_ref[...].astype(jnp.float32)
    if has_ve:
        v = lam_ref[0] * v + lam_ref[1] * ve_ref[...].astype(jnp.float32)
    else:
        v = lam_ref[0] * v
    vm_ref[...] = v.astype(vm_ref.dtype)


def pallas_qkv_prep(qkv, ve2d, cos, sin, lambdas, num_heads, head_dim,
                    attn_scale, block=256):
    T = qkv.shape[0]
    H, D = num_heads, head_dim
    hdim = H * D
    assert qkv.shape[1] == 3 * hdim
    t = _tile(T, block)
    has_ve = ve2d is not None
    eps = float(jnp.finfo(jnp.float32).eps)

    # index_maps get the scalar-prefetch ref (lambdas) as trailing positional arg.
    q_spec = pl.BlockSpec((t, D), lambda ti, h, lam: (ti, h))
    k_spec = pl.BlockSpec((t, D), lambda ti, h, lam: (ti, H + h))
    v_spec = pl.BlockSpec((t, D), lambda ti, h, lam: (ti, 2 * H + h))
    ve_spec = pl.BlockSpec((t, D), lambda ti, h, lam: (ti, h))
    rope_spec = pl.BlockSpec((t, D), lambda ti, h, lam: (ti, 0))  # shared across heads
    out_spec = pl.BlockSpec((t, D), lambda ti, h, lam: (ti, h))

    in_specs = [q_spec, k_spec, v_spec]
    args = [qkv, qkv, qkv]
    if has_ve:
        in_specs.append(ve_spec)
        args.append(ve2d)
    in_specs += [rope_spec, rope_spec]
    args += [cos, sin]

    kernel = functools.partial(_prep_kernel, attn_scale=attn_scale, eps=eps,
                               has_ve=has_ve)
    shape = jax.ShapeDtypeStruct((T, hdim), jnp.bfloat16)
    return pl.pallas_call(
        kernel,
        out_shape=(shape, shape, shape),
        grid_spec=pltpu.PrefetchScalarGridSpec(
            num_scalar_prefetch=1,
            grid=(T // t, H),   # h innermost -> cos/sin blocks not re-fetched per head
            in_specs=in_specs,
            out_specs=[out_spec, out_spec, out_spec]),
        compiler_params=pltpu.CompilerParams(
            dimension_semantics=("parallel", "parallel"),
            vmem_limit_bytes=_VMEM_LIMIT),
    )(lambdas, *args)


# --------------------------------------------------------------------------
# Flash-style attention kernel over a compressed causal grid.
#   grid = (H, n_steps) where n_steps enumerates only lower-triangle (qi, ki)
#   blocks via scalar-prefetched tables; the kv dimension is the "arbitrary"
#   (accumulator-carrying) axis.  Inputs are already normalized/rotated/mixed.
# --------------------------------------------------------------------------
def _flash_attn_kernel(qi_tab, ki_tab, q_ref, k_ref, v_ref, o_ref,
                       m_sc, l_sc, acc_sc, *, tq, tk, bf16_exp):
    s_idx = pl.program_id(1)
    qi = qi_tab[s_idx]
    ki = ki_tab[s_idx]

    @pl.when(ki == 0)
    def _init():
        m_sc[...] = jnp.full(m_sc.shape, -jnp.inf, m_sc.dtype)
        l_sc[...] = jnp.zeros(l_sc.shape, l_sc.dtype)
        acc_sc[...] = jnp.zeros(acc_sc.shape, acc_sc.dtype)

    # kv block is fully visible iff its last column <= the q block's first row.
    needs_mask = (ki + 1) * tk - 1 > qi * tq
    is_last = ki == ((qi + 1) * tq - 1) // tk

    def step(apply_mask):
        # q was pre-scaled by attn_scale in the prep kernel -> no per-tile scale.
        s = lax.dot_general(q_ref[...], k_ref[...], (((1,), (1,)), ((), ())),
                            preferred_element_type=jnp.float32)
        if apply_mask:
            row = qi * tq + lax.broadcasted_iota(jnp.int32, (tq, 1), 0)
            col = ki * tk + lax.broadcasted_iota(jnp.int32, (1, tk), 1)
            s = jnp.where(col <= row, s, -1e30)

        m_prev = m_sc[...]
        m_new = jnp.maximum(m_prev, jnp.max(s, axis=-1, keepdims=True))
        alpha = jnp.exp(m_prev - m_new)
        if bf16_exp:
            # v6e/v7x EUP has a bf16 path; mask + max-subtract stay in f32,
            # row-sum accumulates in f32.
            p = jnp.exp((s - m_new).astype(jnp.bfloat16))
            l_sc[...] = alpha * l_sc[...] + jnp.sum(p, axis=-1, keepdims=True,
                                                    dtype=jnp.float32)
            pv = jnp.dot(p, v_ref[...], preferred_element_type=jnp.float32)
        else:
            p = jnp.exp(s - m_new)
            l_sc[...] = alpha * l_sc[...] + jnp.sum(p, axis=-1, keepdims=True)
            pv = jnp.dot(p.astype(jnp.bfloat16), v_ref[...],
                         preferred_element_type=jnp.float32)
        acc_sc[...] = alpha * acc_sc[...] + pv
        m_sc[...] = m_new

    @pl.when(jnp.logical_not(needs_mask))
    def _fully_visible():
        step(apply_mask=False)

    @pl.when(needs_mask)
    def _diagonal():
        step(apply_mask=True)

    @pl.when(is_last)
    def _finalize():
        o_ref[...] = (acc_sc[...] *
                      pl.reciprocal(l_sc[...], approx=False)).astype(o_ref.dtype)


def _causal_schedule(nq, tq, nk, tk):
    """(qi, ki) block schedule covering only lower-triangle blocks."""
    qi_list, ki_list = [], []
    for qi in range(nq):
        ki_hi = min(((qi + 1) * tq - 1) // tk, nk - 1)
        for ki in range(ki_hi + 1):
            qi_list.append(qi)
            ki_list.append(ki)
    return np.asarray(qi_list, np.int32), np.asarray(ki_list, np.int32)


def pallas_flash_attention(q_n, k_n, v_m, num_heads, head_dim,
                           q_block=None, kv_block=128):
    T, hdim = q_n.shape
    H, D = num_heads, head_dim
    assert hdim == H * D
    gen = _tpu_generation()
    if q_block is None:
        # 256-row q tiles fill the 2x256^2 MXU on v6e/v7x; keep 128 on v5e/unknown.
        q_block = 256 if gen >= 6 else 128
    tq = _tile(T, q_block)
    tk = _tile(T, kv_block)
    nq, nk = T // tq, T // tk
    qi_tab, ki_tab = _causal_schedule(nq, tq, nk, tk)
    n_steps = int(qi_tab.shape[0])

    kernel = functools.partial(_flash_attn_kernel, tq=tq, tk=tk,
                               bf16_exp=(gen >= 6))

    # index_maps get the scalar-prefetch refs (qi_tab, ki_tab) as trailing args.
    q_spec = pl.BlockSpec((tq, D), lambda h, s, qt, kt: (qt[s], h))
    k_spec = pl.BlockSpec((tk, D), lambda h, s, qt, kt: (kt[s], h))
    v_spec = pl.BlockSpec((tk, D), lambda h, s, qt, kt: (kt[s], h))
    out_spec = pl.BlockSpec((tq, D), lambda h, s, qt, kt: (qt[s], h))

    return pl.pallas_call(
        kernel,
        out_shape=jax.ShapeDtypeStruct((T, hdim), jnp.bfloat16),
        grid_spec=pltpu.PrefetchScalarGridSpec(
            num_scalar_prefetch=2,
            grid=(H, n_steps),
            in_specs=[q_spec, k_spec, v_spec],
            out_specs=out_spec,
            scratch_shapes=[
                pltpu.VMEM((tq, 1), jnp.float32),   # running max m
                pltpu.VMEM((tq, 1), jnp.float32),   # running denom l
                pltpu.VMEM((tq, D), jnp.float32),   # output accumulator
            ]),
        compiler_params=pltpu.CompilerParams(
            dimension_semantics=("parallel", "arbitrary"),
            vmem_limit_bytes=_VMEM_LIMIT),
    )(jnp.asarray(qi_tab), jnp.asarray(ki_tab), q_n, k_n, v_m)


# --------------------------------------------------------------------------
# Module glue (parameter init, one-time weight prep, rotary tables, wrapper).
# --------------------------------------------------------------------------
def init_params(key, dim, num_heads, head_dim):
    hdim = num_heads * head_dim
    k1, k2 = jax.random.split(key)
    std = 0.5 * dim ** (-0.5)
    bound = (3.0 ** 0.5) * std
    qkv_w = jax.random.uniform(k1, (3, hdim, dim), jnp.float32, -bound, bound)
    # NOTE: the PyTorch module zero-inits c_proj.weight; we use a small uniform
    # init so the output-projection kernel is actually exercised.
    pstd = 0.5 * hdim ** (-0.5)
    pbound = (3.0 ** 0.5) * pstd
    c_proj_w = jax.random.uniform(k2, (dim, hdim), jnp.float32, -pbound, pbound)
    lambdas = jnp.array([0.5, 0.5], jnp.float32)
    return dict(qkv_w=qkv_w, c_proj_w=c_proj_w, lambdas=lambdas)


def prepare_params(params):
    """One-time weight pre-transpose + bf16 cast, kept out of the per-forward
    wrapper so no per-call XLA transpose/cast HBM round trip."""
    qkv_w = params["qkv_w"]
    hdim3, dim = qkv_w.shape[0] * qkv_w.shape[1], qkv_w.shape[2]
    return dict(
        qkv_w_t=jnp.asarray(qkv_w.reshape(hdim3, dim).T, jnp.bfloat16),   # (dim, 3*hdim)
        c_proj_w_t=jnp.asarray(params["c_proj_w"].T, jnp.bfloat16),       # (hdim, dim)
        lambdas=params["lambdas"].astype(jnp.float32),
    )


def rotary_tables(head_dim, max_seq_len):
    """Full-D tables for the rotate-half formulation: cos_full=[c,c], sin_full=[s,-s]."""
    n = head_dim // 4
    angular_freq = (1.0 / 1024.0) ** jnp.linspace(0.0, 1.0, n, dtype=jnp.float32)
    angular_freq = jnp.concatenate([angular_freq, jnp.zeros(n, jnp.float32)])
    t = jnp.arange(max_seq_len, dtype=jnp.float32)
    theta = t[:, None] * angular_freq[None, :]          # (T, D//2)
    cos, sin = jnp.cos(theta), jnp.sin(theta)
    cos_full = jnp.concatenate([cos, cos], axis=-1)     # (T, D)
    sin_full = jnp.concatenate([sin, -sin], axis=-1)    # (T, D)
    return cos_full, sin_full


def causal_self_attention(prepared, x, ve, cos_full, sin_full, num_heads, head_dim,
                          attn_scale=0.12):
    B, T, dim = x.shape
    assert B == 1, "Must use batch size = 1 (matches the PyTorch module)"
    assert cos_full.shape[0] >= T
    hdim = num_heads * head_dim

    x2d = x[0].astype(jnp.bfloat16)                                       # (T, dim)
    qkv = pallas_matmul(x2d, prepared["qkv_w_t"], out_dtype=jnp.bfloat16)  # (T, 3*hdim)

    ve2d = None if ve is None else ve[0].astype(jnp.bfloat16)             # (T, hdim)
    q_n, k_n, v_m = pallas_qkv_prep(qkv, ve2d, cos_full[:T], sin_full[:T],
                                    prepared["lambdas"], num_heads, head_dim,
                                    attn_scale)                           # 3x (T, hdim)

    y = pallas_flash_attention(q_n, k_n, v_m, num_heads, head_dim)        # (T, hdim)

    out = pallas_matmul(y, prepared["c_proj_w_t"], out_dtype=jnp.float32)  # (T, dim)
    return out[None]                                                      # (1, T, dim)


# --------------------------------------------------------------------------
# Pure-JAX reference (mirrors the kernel's bf16 quantization points).
# --------------------------------------------------------------------------
def reference(params, x, ve, cos_full, sin_full, num_heads, head_dim,
              attn_scale=0.12):
    B, T, dim = x.shape
    hdim = num_heads * head_dim
    eps = float(jnp.finfo(jnp.float32).eps)
    hp = lax.Precision.HIGHEST

    def bf(a):
        return a.astype(jnp.bfloat16).astype(jnp.float32)

    qkv = jnp.dot(bf(x[0]), bf(params["qkv_w"].reshape(3 * hdim, dim).T),
                  precision=hp)
    qkv = bf(qkv).reshape(T, 3, num_heads, head_dim)
    q, k, v = qkv[:, 0], qkv[:, 1], qkv[:, 2]                    # (T, H, D)

    def rms(a):
        return a * lax.rsqrt(jnp.mean(a * a, -1, keepdims=True) + eps)

    cos = cos_full[:T, None, :]
    sin = sin_full[:T, None, :]

    def rope(a):
        return a * cos + jnp.roll(a, head_dim // 2, axis=-1) * sin

    q = bf(rope(rms(q)) * attn_scale)        # attn_scale folded into q (as in kernel)
    k = bf(rope(rms(k)))
    lam = params["lambdas"]
    if ve is None:
        v = lam[0] * v
    else:
        v = lam[0] * v + lam[1] * bf(ve[0]).reshape(T, num_heads, head_dim)
    v = bf(v)

    s = jnp.einsum("thd,shd->hts", q, k, precision=hp)
    mask = jnp.tril(jnp.ones((T, T), bool))
    s = jnp.where(mask[None], s, -jnp.inf)
    p = jax.nn.softmax(s, axis=-1)
    o = jnp.einsum("hts,shd->thd", bf(p), v, precision=hp).reshape(T, hdim)
    o = bf(o)
    return jnp.dot(o, bf(params["c_proj_w"].T), precision=hp)[None]


if __name__ == "__main__":
    dim = 128
    num_heads = 4
    head_dim = 128          # module default head_dim (lane-dense blocks)
    max_seq_len = 256
    B, T = 1, 256
    hdim = num_heads * head_dim

    key = jax.random.PRNGKey(0)
    kp, kx, kv = jax.random.split(key, 3)
    params = init_params(kp, dim, num_heads, head_dim)
    prepared = prepare_params(params)     # one-time transpose/cast, not per forward
    cos_full, sin_full = rotary_tables(head_dim, max_seq_len)

    x = jax.random.normal(kx, (B, T, dim), jnp.float32)
    ve = jax.random.normal(kv, (B, T, hdim), jnp.float32)

    out = causal_self_attention(prepared, x, ve, cos_full, sin_full,
                                num_heads, head_dim)
    out = jax.block_until_ready(out)
    assert out.shape == (B, T, dim)
    ref = reference(params, x, ve, cos_full, sin_full, num_heads, head_dim)
    assert jnp.allclose(out, ref, rtol=2e-2, atol=2e-2), (
        float(jnp.max(jnp.abs(out - ref))))

    # ve=None path (ve input dropped entirely -> no zeros DMA)
    out2 = jax.block_until_ready(
        causal_self_attention(prepared, x, None, cos_full, sin_full,
                              num_heads, head_dim))
    ref2 = reference(params, x, None, cos_full, sin_full, num_heads, head_dim)
    assert jnp.allclose(out2, ref2, rtol=2e-2, atol=2e-2), (
        float(jnp.max(jnp.abs(out2 - ref2))))

    print("KERNEL_OK")
</pallas_src>

<mosaic_0001>
module attributes {stable_mosaic.version = 11 : i64} {
  func.func @_matmul_kernel(%arg0: i32, %arg1: i32, %arg2: i32, %arg3: memref<256x128xbf16, #tpu.memory_space<vmem>>, %arg4: memref<128x256xbf16, #tpu.memory_space<vmem>>, %arg5: memref<256x256xbf16, #tpu.memory_space<vmem>>, %arg6: memref<256x256xf32, #tpu.memory_space<vmem>>) attributes {dimension_semantics = [#tpu.dimension_semantics<parallel>, #tpu.dimension_semantics<parallel>, #tpu.dimension_semantics<arbitrary>], iteration_bounds = array<i64: 1, 6, 1>, scalar_prefetch = 0 : i64, scratch_operands = 1 : i64, tpu.core_type = #tpu.core_type<tc>, window_params = [{transform_indices = @transform_0, window_bounds = array<i64: 256, 128>}, {transform_indices = @transform_1, window_bounds = array<i64: 128, 256>}, {transform_indices = @transform_2, window_bounds = array<i64: 256, 256>}]} {
    %c0_i32 = arith.constant 0 : i32
    %0 = arith.cmpi eq, %arg2, %c0_i32 : i32
    %1 = arith.extui %0 : i1 to i32
    %c0_i32_0 = arith.constant 0 : i32
    %2 = arith.cmpi ne, %1, %c0_i32_0 : i32
    scf.if %2 {
      %cst_10 = arith.constant 0.000000e+00 : f32
      %12 = vector.broadcast %cst_10 : f32 to vector<256x256xf32>
      %c0_11 = arith.constant 0 : index
      %c0_12 = arith.constant 0 : index
      %13 = vector.load %arg6[%c0_11, %c0_12] : memref<256x256xf32, #tpu.memory_space<vmem>>, vector<256x256xf32>
      tpu.vector_store %arg6[%c0_11, %c0_12], %12 {strides = array<i32>} : memref<256x256xf32, #tpu.memory_space<vmem>>, vector<256x256xf32>,
    } else {
    }
    %c0 = arith.constant 0 : index
    %c0_1 = arith.constant 0 : index
    %3 = vector.load %arg6[%c0, %c0_1] : memref<256x256xf32, #tpu.memory_space<vmem>>, vector<256x256xf32>
    %c0_2 = arith.constant 0 : index
    %c0_3 = arith.constant 0 : index
    %4 = vector.load %arg3[%c0_2, %c0_3] : memref<256x128xbf16, #tpu.memory_space<vmem>>, vector<256x128xbf16>
    %c0_4 = arith.constant 0 : index
    %c0_5 = arith.constant 0 : index
    %5 = vector.load %arg4[%c0_4, %c0_5] : memref<128x256xbf16, #tpu.memory_space<vmem>>, vector<128x256xbf16>
    %cst = arith.constant dense<0.000000e+00> : vector<256x256xf32>
    %6 = tpu.matmul %4, %5, %cst {dimension_numbers = #tpu.dot_dimension_numbers<[1], [0], [0], [1], [0, 0, 1, 1], [], []>} : vector<256x128xbf16>, vector<128x256xbf16>, vector<256x256xf32> -> vector<256x256xf32>
    %7 = arith.addf %3, %6 : vector<256x256xf32>
    %c0_6 = arith.constant 0 : index
    %c0_7 = arith.constant 0 : index
    %8 = vector.load %arg6[%c0_6, %c0_7] : memref<256x256xf32, #tpu.memory_space<vmem>>, vector<256x256xf32>
    tpu.vector_store %arg6[%c0_6, %c0_7], %7 {strides = array<i32>} : memref<256x256xf32, #tpu.memory_space<vmem>>, vector<256x256xf32>,
    %c0_i32_8 = arith.constant 0 : i32
    %9 = arith.cmpi eq, %arg2, %c0_i32_8 : i32
    %10 = arith.extui %9 : i1 to i32
    %c0_i32_9 = arith.constant 0 : i32
    %11 = arith.cmpi ne, %10, %c0_i32_9 : i32
    scf.if %11 {
      %c0_10 = arith.constant 0 : index
      %c0_11 = arith.constant 0 : index
      %12 = vector.load %arg6[%c0_10, %c0_11] : memref<256x256xf32, #tpu.memory_space<vmem>>, vector<256x256xf32>
      %13 = arith.truncf %12 : vector<256x256xf32> to vector<256x256xbf16>
      %c0_12 = arith.constant 0 : index
      %c0_13 = arith.constant 0 : index
      %14 = vector.load %arg5[%c0_12, %c0_13] : memref<256x256xbf16, #tpu.memory_space<vmem>>, vector<256x256xbf16>
      tpu.vector_store %arg5[%c0_12, %c0_13], %13 {strides = array<i32>} : memref<256x256xbf16, #tpu.memory_space<vmem>>, vector<256x256xbf16>,
    } else {
    }
    return
  }
  func.func @transform_0(%arg0: i32, %arg1: i32, %arg2: i32) -> (i32, i32) {
    %c0_i32 = arith.constant 0 : i32
    return %arg0, %arg2 : i32, i32
  }
  func.func @transform_1(%arg0: i32, %arg1: i32, %arg2: i32) -> (i32, i32) {
    %c0_i32 = arith.constant 0 : i32
    return %arg2, %arg1 : i32, i32
  }
  func.func @transform_2(%arg0: i32, %arg1: i32, %arg2: i32) -> (i32, i32) {
    %c0_i32 = arith.constant 0 : i32
    return %arg0, %arg1 : i32, i32
  }
}

</mosaic_0001>

<llo_original>
// kernel: tpu_custom_call.1
$region0: #{tpu_custom_call.1}
  #allocation0 [shape = 'u32[]', space=smem, size = 0x4, offset = 0x4, fixed_abs, tag = 'smem constant byte address 0x4 - core index']
  #allocation1 [shape = 'u32[144,128]{1,0:T(1,128)}', space=vmem, size = 0x12000, scoped, tag = 'internal scratch']
  #allocation2 [shape = 'f32[256,256]{1,0:T(8,128)}', space=vmem, size = 0x40000, scoped, tag = 'scratch operand']
  %s0 = inlined_call_operand.hbm [shape: bf16[256,128], index: 0, kind: input, shape index: {}]
  %s1 = inlined_call_operand.hbm [shape: bf16[128,1536], index: 1, kind: input, shape index: {}]
  %s2 = inlined_call_operand.hbm [shape: bf16[256,1536], index: 2, kind: output, shape index: {}]
  %s3 = sld [smem:[#allocation0]]
  $region57: #{tpu_custom_call.1} parent=0
    _
  %s5 = ssub.s32 1, %s3
  %s6 = scalar_select 0, %s5, %s3
  $region1: #{tpu_custom_call.1} parent=0
    #allocation3 [shape = 'u8[65536]{0}', space=vmem, size = 0x10000, scoped, tag = 'input window, operand 0, single buffered']
    #allocation4 [shape = 's32[2]{0}', space=sflag, size = 0x8, scoped, tag = 'scoped memory for tpu_custom_call.1']
    #allocation5 [shape = 's32[2]{0}', space=sflag, size = 0x8, scoped, tag = 'scoped memory for tpu_custom_call.1']
    #allocation6 [shape = 'u8[131072]{0}', space=vmem, size = 0x20000, scoped, tag = 'input window, operand 1']
    #allocation7 [shape = 's32[2]{0}', space=sflag, size = 0x8, scoped, tag = 'scoped memory for tpu_custom_call.1']
    #allocation8 [shape = 'u8[262144]{0}', space=vmem, size = 0x40000, scoped, tag = 'output window, operand 0']
    %7 = vsyncpa [#allocation4], 0
    %8 = vsyncpa [#allocation7], 0
    %s9 = scalar_lea.sflag [#allocation7], 1
    %10 = vsyncpa %s9, 0
    %11 = vsyncpa [#allocation5], 0
    %s12 = scalar_lea.sflag [#allocation5], 1
    %13 = vsyncpa %s12, 0
    loop: start=0, step=1, limit=8
    $region2: #{tpu_custom_call.1} parent=1 // loop_pre_header
      _
    $region3: #{tpu_custom_call.1} parent=1 // loop_header
      %s15 = sphi 0, %s19
      %p16 = scmp.ge.s32.totalorder %s15, 8
      %s22 = sphi 0, %s41
      %s23 = sphi 0, %s37
      %s24 = sphi 0, %s33
      %s25 = sphi 0, %s22
      %s26 = sphi 0, %s23
      %s27 = sphi 0, %s24
      %s28 = sphi 0, %s25
      %s29 = sphi 0, %s26
      %s30 = sphi 0, %s27
      %s46 = sphi 0, %s48
      %s49 = sphi 0, %s46
      %s50 = sphi 0, %s49
      %s66 = sphi 0, %s50
      %s74 = sphi 0, %s76
      %s77 = sphi 0, %s74
      %s78 = sphi 0, %s77
      %s94 = sphi 0, %s78
      %s102 = sphi 0, %s104
      %s105 = sphi 0, %s102
      %s106 = sphi 0, %s105
      %s122 = sphi 0, %s106
    $region4: #{tpu_custom_call.1} parent=1 // loop_header_branch
      %18 = sbr.rel (%p16) target = $region8
    $region5: #{tpu_custom_call.1} parent=1 // loop_body
      %s20 = ssub.s32 %s15, 1
      %s21 = ssub.s32 %s15, 2
      %s31 = sadd.s32 1, %s24
      %p32 = scmp.ge.s32.totalorder %s31, 1
      %s33 = scalar_select %p32, 0, %s31
      %s34 = sadd.s32 1, %s23
      %s35 = scalar_select %p32, %s34, %s23
      %p36 = scmp.ge.s32.totalorder %s35, 6
      %s37 = scalar_select %p36, 0, %s35
      %s38 = sadd.s32 1, %s22
      %s39 = scalar_select %p36, %s38, %s22
      %p40 = scmp.ge.s32.totalorder %s39, 1
      %s41 = scalar_select %p40, 0, %s39
      %s42 = ssub.s32 %s22, %s41
      %s43 = ssub.s32 %s24, %s33
      %s44 = sor.u32 %s42, %s43
      %p45 = scmp.eq.s32.totalorder %s44, 0
      %s47 = sadd.s32 %s46, 1
      %s48 = scalar_select %p45, %s46, %s47
      %p51 = pneg %p45
      %p52 = scmp.eq.s32.totalorder %s15, 5
      %p53 = por %p51, %p52
      %p54 = scmp.ne.s32.totalorder %s46, %s49
      %p55 = scmp.eq.s32.totalorder %s15, 0
      %p56 = por %p54, %p55
      %p57 = scmp.ne.s32.totalorder %s46, %s49
      %p58 = scmp.eq.s32.totalorder %s20, 5
      %p59 = por %p57, %p58
      %p60 = scmp.ne.s32.totalorder %s49, %s50
      %p61 = scmp.eq.s32.totalorder %s20, 0
      %p62 = por %p60, %p61
      %p63 = scmp.ne.s32.totalorder %s49, %s50
      %p64 = scmp.eq.s32.totalorder %s21, 5
      %p65 = por %p63, %p64
      %p67 = scmp.ne.s32.totalorder %s50, %s66
      %p68 = scmp.eq.s32.totalorder %s21, 0
      %p69 = por %p67, %p68
      %s70 = ssub.s32 %s24, %s33
      %s71 = ssub.s32 %s23, %s37
      %s72 = sor.u32 %s70, %s71
      %p73 = scmp.eq.s32.totalorder %s72, 0
      %s75 = sadd.s32 %s74, 1
      %s76 = scalar_select %p73, %s74, %s75
      %p79 = pneg %p73
      %p80 = scmp.eq.s32.totalorder %s15, 5
      %p81 = por %p79, %p80
      %p82 = scmp.ne.s32.totalorder %s74, %s77
      %p83 = scmp.eq.s32.totalorder %s15, 0
      %p84 = por %p82, %p83
      %p85 = scmp.ne.s32.totalorder %s74, %s77
      %p86 = scmp.eq.s32.totalorder %s20, 5
      %p87 = por %p85, %p86
      %p88 = scmp.ne.s32.totalorder %s77, %s78
      %p89 = scmp.eq.s32.totalorder %s20, 0
      %p90 = por %p88, %p89
      %p91 = scmp.ne.s32.totalorder %s77, %s78
      %p92 = scmp.eq.s32.totalorder %s21, 5
      %p93 = por %p91, %p92
      %p95 = scmp.ne.s32.totalorder %s78, %s94
      %p96 = scmp.eq.s32.totalorder %s21, 0
      %p97 = por %p95, %p96
      %s98 = ssub.s32 %s22, %s41
      %s99 = ssub.s32 %s23, %s37
      %s100 = sor.u32 %s98, %s99
      %p101 = scmp.eq.s32.totalorder %s100, 0
      %s103 = sadd.s32 %s102, 1
      %s104 = scalar_select %p101, %s102, %s103
      %p107 = pneg %p101
      %p108 = scmp.eq.s32.totalorder %s15, 5
      %p109 = por %p107, %p108
      %p110 = scmp.ne.s32.totalorder %s102, %s105
      %p111 = scmp.eq.s32.totalorder %s15, 0
      %p112 = por %p110, %p111
      %p113 = scmp.ne.s32.totalorder %s102, %s105
      %p114 = scmp.eq.s32.totalorder %s20, 5
      %p115 = por %p113, %p114
      %p116 = scmp.ne.s32.totalorder %s105, %s106
      %p117 = scmp.eq.s32.totalorder %s20, 0
      %p118 = por %p116, %p117
      %p119 = scmp.ne.s32.totalorder %s105, %s106
      %p120 = scmp.eq.s32.totalorder %s21, 5
      %p121 = por %p119, %p120
      %p123 = scmp.ne.s32.totalorder %s106, %s122
      %p124 = scmp.eq.s32.totalorder %s21, 0
      %p125 = por %p123, %p124
      %p126 = scmp.le.s32.totalorder 1, %s15
      %p127 = scmp.lt.s32.totalorder %s15, 7
      %p128 = pnand %p126, %p127
      %p129 = pneg %p128
      // Predicated region
      $region9: #{tpu_custom_call.1} parent=5 // pred_check
        _
      $region10: #{tpu_custom_call.1} parent=5 // pred_check_branch
        %131 = sbr.rel (%p128) target = $region12
      $region11: #{tpu_custom_call.1} parent=5 // pred_region
        %s132 = ssub.s32 %s15, 1
        // Predicated region
        $region13: #{tpu_custom_call.1} parent=11 // pred_check
          %p133 = pneg %p62
        $region14: #{tpu_custom_call.1} parent=11 // pred_check_branch
          %135 = sbr.rel (%p133) target = $region16
        $region15: #{tpu_custom_call.1} parent=11 // pred_region
          %s136 = smul.u32 32, %s25
          %s138 = ssub.s32 2048, 2048
          %139 = vsyncadd [#allocation4], %s138
          %s140 = sadd.s32 %s27, %s136
          %s141 = smul.addr %s140, 64
          %s142 = scalar_lea.hbm %s0, %s141
          %s143 = sshll.u32 [#allocation3], 4
          %s144 = int_to_ptr.vmem [resolvable:$true] %s143
          %149 = dma.hbm_to_vmem [thread:$0]  %s142, 2048, %s144, [#allocation4], 64, 64, 4
        $region16: #{tpu_custom_call.1} parent=11 // pred_fallthru
          _
      $region12: #{tpu_custom_call.1} parent=5 // pred_fallthru
        _
      %p150 = scmp.lt.s32.totalorder %s15, 6
      // Predicated region
      $region17: #{tpu_custom_call.1} parent=5 // pred_check
        %p151 = pneg %p150
      $region18: #{tpu_custom_call.1} parent=5 // pred_check_branch
        %153 = sbr.rel (%p151) target = $region20
      $region19: #{tpu_custom_call.1} parent=5 // pred_region
        // Predicated region
        $region21: #{tpu_custom_call.1} parent=19 // pred_check
          %p154 = pneg %p84
        $region22: #{tpu_custom_call.1} parent=19 // pred_check_branch
          %156 = sbr.rel (%p154) target = $region24
        $region23: #{tpu_custom_call.1} parent=19 // pred_region
          %s157 = sand.u32 %s74, 1
          %s158 = scalar_lea.sflag [#allocation7], %s157
          %s159 = sand.u32 %s74, 1
          %s160 = smul.addr %s159, 128
          %s161 = scalar_lea.vmem [#allocation6], %s160
          %s162 = smul.u32 16, %s24
          %s163 = smul.u32 2, %s23
          %s165 = ssub.s32 2048, 2048
          %166 = vsyncadd %s158, %s165
          %s167 = smul.addr %s162, 12
          %s168 = sadd.s32 %s163, %s167
          %s169 = smul.addr %s168, 64
          %s170 = scalar_lea.hbm %s1, %s169
          %s171 = sshll.u32 %s161, 4
          %s172 = int_to_ptr.vmem [resolvable:$true] %s171
          %177 = dma.hbm_to_vmem [thread:$0]  %s170, 2048, %s172, %s158, 768, 128, 8
        $region24: #{tpu_custom_call.1} parent=19 // pred_fallthru
          _
      $region20: #{tpu_custom_call.1} parent=5 // pred_fallthru
        _
      %p178 = scmp.le.s32.totalorder 1, %s15
      %p179 = scmp.lt.s32.totalorder %s15, 7
      %p180 = pnand %p178, %p179
      %p181 = pneg %p180
      // Predicated region
      $region25: #{tpu_custom_call.1} parent=5 // pred_check
        _
      $region26: #{tpu_custom_call.1} parent=5 // pred_check_branch
        %183 = sbr.rel (%p180) target = $region28
      $region27: #{tpu_custom_call.1} parent=5 // pred_region
        %s184 = ssub.s32 %s15, 1
        // Predicated region
        $region29: #{tpu_custom_call.1} parent=27 // pred_check
          %p185 = pneg %p62
        $region30: #{tpu_custom_call.1} parent=27 // pred_check_branch
          %187 = sbr.rel (%p185) target = $region32
        $region31: #{tpu_custom_call.1} parent=27 // pred_region
          %188 = dma.done [#allocation4], 2048
        $region32: #{tpu_custom_call.1} parent=27 // pred_fallthru
          _
        %s189 = sand.u32 %s77, 1
        %s190 = scalar_lea.sflag [#allocation7], %s189
        %s191 = sand.u32 %s77, 1
        %s192 = smul.addr %s191, 128
        %s193 = scalar_lea.vmem [#allocation6], %s192
        // Predicated region
        $region33: #{tpu_custom_call.1} parent=27 // pred_check
          %p194 = pneg %p90
        $region34: #{tpu_custom_call.1} parent=27 // pred_check_branch
          %196 = sbr.rel (%p194) target = $region36
        $region35: #{tpu_custom_call.1} parent=27 // pred_region
          %197 = dma.done %s190, 2048
        $region36: #{tpu_custom_call.1} parent=27 // pred_fallthru
          _
        %p198 = pneg %p62
        %p199 = pneg %p59
        %s200 = sand.u32 %s77, 1
        %s201 = scalar_lea.sflag [#allocation7], %s200
        %s202 = sand.u32 %s77, 1
        %s203 = smul.addr %s202, 128
        %s204 = scalar_lea.vmem [#allocation6], %s203
        %p205 = pneg %p90
        %p206 = pneg %p87
        %p207 = pneg %p118
        %p208 = pneg %p115
        %s209 = sand.u32 %s105, 1
        %s210 = scalar_lea.sflag [#allocation5], %s209
        %s211 = sand.u32 %s105, 1
        %s212 = smul.addr %s211, 256
        %s213 = scalar_lea.vmem [#allocation8], %s212
        %s214 = smul.u32 32, %s25
        %s215 = smul.u32 16, %s27
        %s216 = smul.u32 2, %s26
        %s217 = smul.u32 32, %s25
        %s218 = smul.u32 2, %s26
        %p220 = scmp.eq.s32.totalorder %s27, 0
        // Predicated region
        $region37: #{tpu_custom_call.1} parent=27 // pred_check
          %p221 = pneg %p220
        $region38: #{tpu_custom_call.1} parent=27 // pred_check_branch
          %223 = sbr.rel (%p221) target = $region40
        $region39: #{tpu_custom_call.1} parent=27 // pred_region
          %224 = vst [vmem:[#allocation2] sm:$0xff] 0.0
          %225 = vst [vmem:[#allocation2 + $0x8] sm:$0xff] 0.0
          %226 = vst [vmem:[#allocation2 + $0x10] sm:$0xff] 0.0
          %227 = vst [vmem:[#allocation2 + $0x18] sm:$0xff] 0.0
          %228 = vst [vmem:[#allocation2 + $0x20] sm:$0xff] 0.0
          %229 = vst [vmem:[#allocation2 + $0x28] sm:$0xff] 0.0
          %230 = vst [vmem:[#allocation2 + $0x30] sm:$0xff] 0.0
          %231 = vst [vmem:[#allocation2 + $0x38] sm:$0xff] 0.0
          %232 = vst [vmem:[#allocation2 + $0x40] sm:$0xff] 0.0
          %233 = vst [vmem:[#allocation2 + $0x48] sm:$0xff] 0.0
          %234 = vst [vmem:[#allocation2 + $0x50] sm:$0xff] 0.0
          %235 = vst [vmem:[#allocation2 + $0x58] sm:$0xff] 0.0
          %236 = vst [vmem:[#allocation2 + $0x60] sm:$0xff] 0.0
          %237 = vst [vmem:[#allocation2 + $0x68] sm:$0xff] 0.0
          %238 = vst [vmem:[#allocation2 + $0x70] sm:$0xff] 0.0
          %239 = vst [vmem:[#allocation2 + $0x78] sm:$0xff] 0.0
          %240 = vst [vmem:[#allocation2 + $0x80] sm:$0xff] 0.0
          %241 = vst [vmem:[#allocation2 + $0x88] sm:$0xff] 0.0
          %242 = vst [vmem:[#allocation2 + $0x90] sm:$0xff] 0.0
          %243 = vst [vmem:[#allocation2 + $0x98] sm:$0xff] 0.0
          %244 = vst [vmem:[#allocation2 + $0xa0] sm:$0xff] 0.0
          %245 = vst [vmem:[#allocation2 + $0xa8] sm:$0xff] 0.0
          %246 = vst [vmem:[#allocation2 + $0xb0] sm:$0xff] 0.0
          %247 = vst [vmem:[#allocation2 + $0xb8] sm:$0xff] 0.0
          %248 = vst [vmem:[#allocation2 + $0xc0] sm:$0xff] 0.0
          %249 = vst [vmem:[#allocation2 + $0xc8] sm:$0xff] 0.0
          %250 = vst [vmem:[#allocation2 + $0xd0] sm:$0xff] 0.0
          %251 = vst [vmem:[#allocation2 + $0xd8] sm:$0xff] 0.0
          %252 = vst [vmem:[#allocation2 + $0xe0] sm:$0xff] 0.0
          %253 = vst [vmem:[#allocation2 + $0xe8] sm:$0xff] 0.0
          %254 = vst [vmem:[#allocation2 + $0xf0] sm:$0xff] 0.0
          %255 = vst [vmem:[#allocation2 + $0xf8] sm:$0xff] 0.0
          %256 = vst [vmem:[#allocation2 + $0x100] sm:$0xff] 0.0
          %257 = vst [vmem:[#allocation2 + $0x108] sm:$0xff] 0.0
          %258 = vst [vmem:[#allocation2 + $0x110] sm:$0xff] 0.0
          %259 = vst [vmem:[#allocation2 + $0x118] sm:$0xff] 0.0
          %260 = vst [vmem:[#allocation2 + $0x120] sm:$0xff] 0.0
          %261 = vst [vmem:[#allocation2 + $0x128] sm:$0xff] 0.0
          %262 = vst [vmem:[#allocation2 + $0x130] sm:$0xff] 0.0
          %263 = vst [vmem:[#allocation2 + $0x138] sm:$0xff] 0.0
          %264 = vst [vmem:[#allocation2 + $0x140] sm:$0xff] 0.0
          %265 = vst [vmem:[#allocation2 + $0x148] sm:$0xff] 0.0
          %266 = vst [vmem:[#allocation2 + $0x150] sm:$0xff] 0.0
          %267 = vst [vmem:[#allocation2 + $0x158] sm:$0xff] 0.0
          %268 = vst [vmem:[#allocation2 + $0x160] sm:$0xff] 0.0
          %269 = vst [vmem:[#allocation2 + $0x168] sm:$0xff] 0.0
          %270 = vst [vmem:[#allocation2 + $0x170] sm:$0xff] 0.0
          %271 = vst [vmem:[#allocation2 + $0x178] sm:$0xff] 0.0
          %272 = vst [vmem:[#allocation2 + $0x180] sm:$0xff] 0.0
          %273 = vst [vmem:[#allocation2 + $0x188] sm:$0xff] 0.0
          %274 = vst [vmem:[#allocation2 + $0x190] sm:$0xff] 0.0
          %275 = vst [vmem:[#allocation2 + $0x198] sm:$0xff] 0.0
          %276 = vst [vmem:[#allocation2 + $0x1a0] sm:$0xff] 0.0
          %277 = vst [vmem:[#allocation2 + $0x1a8] sm:$0xff] 0.0
          %278 = vst [vmem:[#allocation2 + $0x1b0] sm:$0xff] 0.0
          %279 = vst [vmem:[#allocation2 + $0x1b8] sm:$0xff] 0.0
          %280 = vst [vmem:[#allocation2 + $0x1c0] sm:$0xff] 0.0
          %281 = vst [vmem:[#allocation2 + $0x1c8] sm:$0xff] 0.0
          %282 = vst [vmem:[#allocation2 + $0x1d0] sm:$0xff] 0.0
          %283 = vst [vmem:[#allocation2 + $0x1d8] sm:$0xff] 0.0
          %284 = vst [vmem:[#allocation2 + $0x1e0] sm:$0xff] 0.0
          %285 = vst [vmem:[#allocation2 + $0x1e8] sm:$0xff] 0.0
          %286 = vst [vmem:[#allocation2 + $0x1f0] sm:$0xff] 0.0
          %287 = vst [vmem:[#allocation2 + $0x1f8] sm:$0xff] 0.0
        $region40: #{tpu_custom_call.1} parent=27 // pred_fallthru
          _
        %v288 = vld [vmem:[#allocation2] sm:$0xff]
        %v289 = vld [vmem:[#allocation2 + $0x8] sm:$0xff]
        %v290 = vld [vmem:[#allocation2 + $0x10] sm:$0xff]
        %v291 = vld [vmem:[#allocation2 + $0x18] sm:$0xff]
        %v292 = vld [vmem:[#allocation2 + $0x20] sm:$0xff]
        %v293 = vld [vmem:[#allocation2 + $0x28] sm:$0xff]
        %v294 = vld [vmem:[#allocation2 + $0x30] sm:$0xff]
        %v295 = vld [vmem:[#allocation2 + $0x38] sm:$0xff]
        %v296 = vld [vmem:[#allocation2 + $0x40] sm:$0xff]
        %v297 = vld [vmem:[#allocation2 + $0x48] sm:$0xff]
        %v298 = vld [vmem:[#allocation2 + $0x50] sm:$0xff]
        %v299 = vld [vmem:[#allocation2 + $0x58] sm:$0xff]
        %v300 = vld [vmem:[#allocation2 + $0x60] sm:$0xff]
        %v301 = vld [vmem:[#allocation2 + $0x68] sm:$0xff]
        %v302 = vld [vmem:[#allocation2 + $0x70] sm:$0xff]
        %v303 = vld [vmem:[#allocation2 + $0x78] sm:$0xff]
        %v304 = vld [vmem:[#allocation2 + $0x80] sm:$0xff]
        %v305 = vld [vmem:[#allocation2 + $0x88] sm:$0xff]
        %v306 = vld [vmem:[#allocation2 + $0x90] sm:$0xff]
        %v307 = vld [vmem:[#allocation2 + $0x98] sm:$0xff]
        %v308 = vld [vmem:[#allocation2 + $0xa0] sm:$0xff]
        %v309 = vld [vmem:[#allocation2 + $0xa8] sm:$0xff]
        %v310 = vld [vmem:[#allocation2 + $0xb0] sm:$0xff]
        %v311 = vld [vmem:[#allocation2 + $0xb8] sm:$0xff]
        %v312 = vld [vmem:[#allocation2 + $0xc0] sm:$0xff]
        %v313 = vld [vmem:[#allocation2 + $0xc8] sm:$0xff]
        %v314 = vld [vmem:[#allocation2 + $0xd0] sm:$0xff]
        %v315 = vld [vmem:[#allocation2 + $0xd8] sm:$0xff]
        %v316 = vld [vmem:[#allocation2 + $0xe0] sm:$0xff]
        %v317 = vld [vmem:[#allocation2 + $0xe8] sm:$0xff]
        %v318 = vld [vmem:[#allocation2 + $0xf0] sm:$0xff]
        %v319 = vld [vmem:[#allocation2 + $0xf8] sm:$0xff]
        %v320 = vld [vmem:[#allocation2 + $0x100] sm:$0xff]
        %v321 = vld [vmem:[#allocation2 + $0x108] sm:$0xff]
        %v322 = vld [vmem:[#allocation2 + $0x110] sm:$0xff]
        %v323 = vld [vmem:[#allocation2 + $0x118] sm:$0xff]
        %v324 = vld [vmem:[#allocation2 + $0x120] sm:$0xff]
        %v325 = vld [vmem:[#allocation2 + $0x128] sm:$0xff]
        %v326 = vld [vmem:[#allocation2 + $0x130] sm:$0xff]
        %v327 = vld [vmem:[#allocation2 + $0x138] sm:$0xff]
        %v328 = vld [vmem:[#allocation2 + $0x140] sm:$0xff]
        %v329 = vld [vmem:[#allocation2 + $0x148] sm:$0xff]
        %v330 = vld [vmem:[#allocation2 + $0x150] sm:$0xff]
        %v331 = vld [vmem:[#allocation2 + $0x158] sm:$0xff]
        %v332 = vld [vmem:[#allocation2 + $0x160] sm:$0xff]
        %v333 = vld [vmem:[#allocation2 + $0x168] sm:$0xff]
        %v334 = vld [vmem:[#allocation2 + $0x170] sm:$0xff]
        %v335 = vld [vmem:[#allocation2 + $0x178] sm:$0xff]
        %v336 = vld [vmem:[#allocation2 + $0x180] sm:$0xff]
        %v337 = vld [vmem:[#allocation2 + $0x188] sm:$0xff]
        %v338 = vld [vmem:[#allocation2 + $0x190] sm:$0xff]
        %v339 = vld [vmem:[#allocation2 + $0x198] sm:$0xff]
        %v340 = vld [vmem:[#allocation2 + $0x1a0] sm:$0xff]
        %v341 = vld [vmem:[#allocation2 + $0x1a8] sm:$0xff]
        %v342 = vld [vmem:[#allocation2 + $0x1b0] sm:$0xff]
        %v343 = vld [vmem:[#allocation2 + $0x1b8] sm:$0xff]
        %v344 = vld [vmem:[#allocation2 + $0x1c0] sm:$0xff]
        %v345 = vld [vmem:[#allocation2 + $0x1c8] sm:$0xff]
        %v346 = vld [vmem:[#allocation2 + $0x1d0] sm:$0xff]
        %v347 = vld [vmem:[#allocation2 + $0x1d8] sm:$0xff]
        %v348 = vld [vmem:[#allocation2 + $0x1e0] sm:$0xff]
        %v349 = vld [vmem:[#allocation2 + $0x1e8] sm:$0xff]
        %v350 = vld [vmem:[#allocation2 + $0x1f0] sm:$0xff]
        %v351 = vld [vmem:[#allocation2 + $0x1f8] sm:$0xff]
        %v352 = vld [vmem:[#allocation3] sm:$0xf]
        %v353 = vld [vmem:[#allocation3 + $0x4] sm:$0xf]
        %v354 = vld [vmem:[#allocation3 + $0x8] sm:$0xf]
        %v355 = vld [vmem:[#allocation3 + $0xc] sm:$0xf]
        %v356 = vld [vmem:[#allocation3 + $0x10] sm:$0xf]
        %v357 = vld [vmem:[#allocation3 + $0x14] sm:$0xf]
        %v358 = vld [vmem:[#allocation3 + $0x18] sm:$0xf]
        %v359 = vld [vmem:[#allocation3 + $0x1c] sm:$0xf]
        %v360 = vld [vmem:[#allocation3 + $0x20] sm:$0xf]
        %v361 = vld [vmem:[#allocation3 + $0x24] sm:$0xf]
        %v362 = vld [vmem:[#allocation3 + $0x28] sm:$0xf]
        %v363 = vld [vmem:[#allocation3 + $0x2c] sm:$0xf]
        %v364 = vld [vmem:[#allocation3 + $0x30] sm:$0xf]
        %v365 = vld [vmem:[#allocation3 + $0x34] sm:$0xf]
        %v366 = vld [vmem:[#allocation3 + $0x38] sm:$0xf]
        %v367 = vld [vmem:[#allocation3 + $0x3c] sm:$0xf]
        %v368 = vld [vmem:[#allocation3 + $0x40] sm:$0xf]
        %v369 = vld [vmem:[#allocation3 + $0x44] sm:$0xf]
        %v370 = vld [vmem:[#allocation3 + $0x48] sm:$0xf]
        %v371 = vld [vmem:[#allocation3 + $0x4c] sm:$0xf]
        %v372 = vld [vmem:[#allocation3 + $0x50] sm:$0xf]
        %v373 = vld [vmem:[#allocation3 + $0x54] sm:$0xf]
        %v374 = vld [vmem:[#allocation3 + $0x58] sm:$0xf]
        %v375 = vld [vmem:[#allocation3 + $0x5c] sm:$0xf]
        %v376 = vld [vmem:[#allocation3 + $0x60] sm:$0xf]
        %v377 = vld [vmem:[#allocation3 + $0x64] sm:$0xf]
        %v378 = vld [vmem:[#allocation3 + $0x68] sm:$0xf]
        %v379 = vld [vmem:[#allocation3 + $0x6c] sm:$0xf]
        %v380 = vld [vmem:[#allocation3 + $0x70] sm:$0xf]
        %v381 = vld [vmem:[#allocation3 + $0x74] sm:$0xf]
        %v382 = vld [vmem:[#allocation3 + $0x78] sm:$0xf]
        %v383 = vld [vmem:[#allocation3 + $0x7c] sm:$0xf]
        %v384 = vld [vmem:[%s193] sm:$0xff]
        %v385 = vld [vmem:[%s193 + $0x8] sm:$0xff]
        %v386 = vld [vmem:[%s193 + $0x10] sm:$0xff]
        %v387 = vld [vmem:[%s193 + $0x18] sm:$0xff]
        %v388 = vld [vmem:[%s193 + $0x20] sm:$0xff]
        %v389 = vld [vmem:[%s193 + $0x28] sm:$0xff]
        %v390 = vld [vmem:[%s193 + $0x30] sm:$0xff]
        %v391 = vld [vmem:[%s193 + $0x38] sm:$0xff]
        %v392 = vld [vmem:[%s193 + $0x40] sm:$0xff]
        %v393 = vld [vmem:[%s193 + $0x48] sm:$0xff]
        %v394 = vld [vmem:[%s193 + $0x50] sm:$0xff]
        %v395 = vld [vmem:[%s193 + $0x58] sm:$0xff]
        %v396 = vld [vmem:[%s193 + $0x60] sm:$0xff]
        %v397 = vld [vmem:[%s193 + $0x68] sm:$0xff]
        %v398 = vld [vmem:[%s193 + $0x70] sm:$0xff]
        %v399 = vld [vmem:[%s193 + $0x78] sm:$0xff]
        %v432 = vunpack.c.l.b16 %v352
        %v433 = vunpack.c.l.b16 %v353
        %v434 = vunpack.c.l.b16 %v354
        %v435 = vunpack.c.l.b16 %v355
        %v436 = vunpack.c.l.b16 %v356
        %v437 = vunpack.c.l.b16 %v357
        %v438 = vunpack.c.l.b16 %v358
        %v439 = vunpack.c.l.b16 %v359
        %v440 = vunpack.c.l.b16 %v360
        %v441 = vunpack.c.l.b16 %v361
        %v442 = vunpack.c.l.b16 %v362
        %v443 = vunpack.c.l.b16 %v363
        %v444 = vunpack.c.l.b16 %v364
        %v445 = vunpack.c.l.b16 %v365
        %v446 = vunpack.c.l.b16 %v366
        %v447 = vunpack.c.l.b16 %v367
        %v448 = vunpack.c.l.b16 %v368
        %v449 = vunpack.c.l.b16 %v369
        %v450 = vunpack.c.l.b16 %v370
        %v451 = vunpack.c.l.b16 %v371
        %v452 = vunpack.c.l.b16 %v372
        %v453 = vunpack.c.l.b16 %v373
        %v454 = vunpack.c.l.b16 %v374
        %v455 = vunpack.c.l.b16 %v375
        %v456 = vunpack.c.l.b16 %v376
        %v457 = vunpack.c.l.b16 %v377
        %v458 = vunpack.c.l.b16 %v378
        %v459 = vunpack.c.l.b16 %v379
        %v460 = vunpack.c.l.b16 %v380
        %v461 = vunpack.c.l.b16 %v381
        %v462 = vunpack.c.l.b16 %v382
        %v463 = vunpack.c.l.b16 %v383
        %v464 = vpack.c.b16 %v433, %v432
        %v465 = vpack.c.b16 %v435, %v434
        %v466 = vpack.c.b16 %v437, %v436
        %v467 = vpack.c.b16 %v439, %v438
        %v468 = vpack.c.b16 %v441, %v440
        %v469 = vpack.c.b16 %v443, %v442
        %v470 = vpack.c.b16 %v445, %v444
        %v471 = vpack.c.b16 %v447, %v446
        %v472 = vpack.c.b16 %v449, %v448
        %v473 = vpack.c.b16 %v451, %v450
        %v474 = vpack.c.b16 %v453, %v452
        %v475 = vpack.c.b16 %v455, %v454
        %v476 = vpack.c.b16 %v457, %v456
        %v477 = vpack.c.b16 %v459, %v458
        %v478 = vpack.c.b16 %v461, %v460
        %v479 = vpack.c.b16 %v463, %v462
        %v512 = vunpack.c.l.b16 %v384
        %v513 = vunpack.c.h.b16 %v384
        %v514 = vunpack.c.l.b16 %v385
        %v515 = vunpack.c.h.b16 %v385
        %v516 = vunpack.c.l.b16 %v386
        %v517 = vunpack.c.h.b16 %v386
        %v518 = vunpack.c.l.b16 %v387
        %v519 = vunpack.c.h.b16 %v387
        %v520 = vunpack.c.l.b16 %v388
        %v521 = vunpack.c.h.b16 %v388
        %v522 = vunpack.c.l.b16 %v389
        %v523 = vunpack.c.h.b16 %v389
        %v524 = vunpack.c.l.b16 %v390
        %v525 = vunpack.c.h.b16 %v390
        %v526 = vunpack.c.l.b16 %v391
        %v527 = vunpack.c.h.b16 %v391
        %v528 = vunpack.c.l.b16 %v392
        %v529 = vunpack.c.h.b16 %v392
        %v530 = vunpack.c.l.b16 %v393
        %v531 = vunpack.c.h.b16 %v393
        %v532 = vunpack.c.l.b16 %v394
        %v533 = vunpack.c.h.b16 %v394
        %v534 = vunpack.c.l.b16 %v395
        %v535 = vunpack.c.h.b16 %v395
        %v536 = vunpack.c.l.b16 %v396
        %v537 = vunpack.c.h.b16 %v396
        %v538 = vunpack.c.l.b16 %v397
        %v539 = vunpack.c.h.b16 %v397
        %v540 = vunpack.c.l.b16 %v398
        %v541 = vunpack.c.h.b16 %v398
        %v542 = vunpack.c.l.b16 %v399
        %v543 = vunpack.c.h.b16 %v399
        %v544 = vpack.c.b16 %v514, %v512
        %v545 = vpack.c.b16 %v515, %v513
        %v546 = vpack.c.b16 %v518, %v516
        %v547 = vpack.c.b16 %v519, %v517
        %v548 = vpack.c.b16 %v522, %v520
        %v549 = vpack.c.b16 %v523, %v521
        %v550 = vpack.c.b16 %v526, %v524
        %v551 = vpack.c.b16 %v527, %v525
        %v552 = vpack.c.b16 %v530, %v528
        %v553 = vpack.c.b16 %v531, %v529
        %v554 = vpack.c.b16 %v534, %v532
        %v555 = vpack.c.b16 %v535, %v533
        %v556 = vpack.c.b16 %v538, %v536
        %v557 = vpack.c.b16 %v539, %v537
        %v558 = vpack.c.b16 %v542, %v540
        %v559 = vpack.c.b16 %v543, %v541
        %576 = vmatprep.subr.bf16.mxu0 %v559
        %577 = vmatpush1.bf16.msra.mxu0 %v558
        %578 = vmatprep.subr.bf16.mxu0 %v557
        %579 = vmatpush1.bf16.msra.mxu0 %v556
        %580 = vmatprep.subr.bf16.mxu0 %v555
        %581 = vmatpush1.bf16.msra.mxu0 %v554
        %582 = vmatprep.subr.bf16.mxu0 %v553
        %583 = vmatpush1.bf16.msra.mxu0 %v552
        %584 = vmatprep.subr.bf16.mxu0 %v551
        %585 = vmatpush1.bf16.msra.mxu0 %v550
        %586 = vmatprep.subr.bf16.mxu0 %v549
        %587 = vmatpush1.bf16.msra.mxu0 %v548
        %588 = vmatprep.subr.bf16.mxu0 %v547
        %589 = vmatpush1.bf16.msra.mxu0 %v546
        %590 = vmatprep.subr.bf16.mxu0 %v545
        %591 = vmatpush1.bf16.msra.mxu0 %v544
        %592 = vmatprep.subr.bf16.mxu0 0
        %593 = vmatpush2.bf16.msra.mxu0 0
        %594 = vmatprep.subr.bf16.mxu0 0
        %595 = vmatpush2.bf16.msra.mxu0 0
        %596 = vmatprep.subr.bf16.mxu0 0
        %597 = vmatpush2.bf16.msra.mxu0 0
        %598 = vmatprep.subr.bf16.mxu0 0
        %599 = vmatpush2.bf16.msra.mxu0 0
        %600 = vmatprep.subr.bf16.mxu0 0
        %601 = vmatpush2.bf16.msra.mxu0 0
        %602 = vmatprep.subr.bf16.mxu0 0
        %603 = vmatpush2.bf16.msra.mxu0 0
        %604 = vmatprep.subr.bf16.mxu0 0
        %605 = vmatpush2.bf16.msra.mxu0 0
        %606 = vmatprep.subr.bf16.mxu0 0
        %607 = vmatpush2.bf16.msra.mxu0 0
        %608 = vmatprep.mubr.bf16.mxu0 0
        %609 = vmatmul.mubr.bf16.gmra.mxu0 %v464
        %v610 = vpop.f32.mrf.mxu0
        %v611 = vadd.f32 0.0, %v610
        %v612 = vpop.f32.mrf.mxu0
        %v613 = vadd.f32 0.0, %v612
        %v614 = vpop.f32.mrf.mxu0
        %v615 = vadd.f32 0.0, %v614
        %v616 = vpop.f32.mrf.mxu0
        %v617 = vadd.f32 0.0, %v616
        %618 = vmatprep.mubr.bf16.mxu0 0
        %619 = vmatmul.mubr.bf16.gmra.mxu0 %v465
        %v620 = vpop.f32.mrf.mxu0
        %v621 = vadd.f32 0.0, %v620
        %v622 = vpop.f32.mrf.mxu0
        %v623 = vadd.f32 0.0, %v622
        %v624 = vpop.f32.mrf.mxu0
        %v625 = vadd.f32 0.0, %v624
        %v626 = vpop.f32.mrf.mxu0
        %v627 = vadd.f32 0.0, %v626
        %628 = vmatprep.mubr.bf16.mxu0 0
        %629 = vmatmul.mubr.bf16.gmra.mxu0 %v466
        %v630 = vpop.f32.mrf.mxu0
        %v631 = vadd.f32 0.0, %v630
        %v632 = vpop.f32.mrf.mxu0
        %v633 = vadd.f32 0.0, %v632
        %v634 = vpop.f32.mrf.mxu0
        %v635 = vadd.f32 0.0, %v634
        %v636 = vpop.f32.mrf.mxu0
        %v637 = vadd.f32 0.0, %v636
        %638 = vmatprep.mubr.bf16.mxu0 0
        %639 = vmatmul.mubr.bf16.gmra.mxu0 %v467
        %v640 = vpop.f32.mrf.mxu0
        %v641 = vadd.f32 0.0, %v640
        %v642 = vpop.f32.mrf.mxu0
        %v643 = vadd.f32 0.0, %v642
        %v644 = vpop.f32.mrf.mxu0
        %v645 = vadd.f32 0.0, %v644
        %v646 = vpop.f32.mrf.mxu0
        %v647 = vadd.f32 0.0, %v646
        %648 = vmatprep.mubr.bf16.mxu0 0
        %649 = vmatmul.mubr.bf16.gmra.mxu0 %v468
        %v650 = vpop.f32.mrf.mxu0
        %v651 = vadd.f32 0.0, %v650
        %v652 = vpop.f32.mrf.mxu0
        %v653 = vadd.f32 0.0, %v652
        %v654 = vpop.f32.mrf.mxu0
        %v655 = vadd.f32 0.0, %v654
        %v656 = vpop.f32.mrf.mxu0
        %v657 = vadd.f32 0.0, %v656
        %658 = vmatprep.mubr.bf16.mxu0 0
        %659 = vmatmul.mubr.bf16.gmra.mxu0 %v469
        %v660 = vpop.f32.mrf.mxu0
        %v661 = vadd.f32 0.0, %v660
        %v662 = vpop.f32.mrf.mxu0
        %v663 = vadd.f32 0.0, %v662
        %v664 = vpop.f32.mrf.mxu0
        %v665 = vadd.f32 0.0, %v664
        %v666 = vpop.f32.mrf.mxu0
        %v667 = vadd.f32 0.0, %v666
        %668 = vmatprep.mubr.bf16.mxu0 0
        %669 = vmatmul.mubr.bf16.gmra.mxu0 %v470
        %v670 = vpop.f32.mrf.mxu0
        %v671 = vadd.f32 0.0, %v670
        %v672 = vpop.f32.mrf.mxu0
        %v673 = vadd.f32 0.0, %v672
        %v674 = vpop.f32.mrf.mxu0
        %v675 = vadd.f32 0.0, %v674
        %v676 = vpop.f32.mrf.mxu0
        %v677 = vadd.f32 0.0, %v676
        %678 = vmatprep.mubr.bf16.mxu0 0
        %679 = vmatmul.mubr.bf16.gmra.mxu0 %v471
        %v680 = vpop.f32.mrf.mxu0
        %v681 = vadd.f32 0.0, %v680
        %v682 = vpop.f32.mrf.mxu0
        %v683 = vadd.f32 0.0, %v682
        %v684 = vpop.f32.mrf.mxu0
        %v685 = vadd.f32 0.0, %v684
        %v686 = vpop.f32.mrf.mxu0
        %v687 = vadd.f32 0.0, %v686
        %688 = vmatprep.mubr.bf16.mxu0 0
        %689 = vmatmul.mubr.bf16.gmra.mxu0 %v472
        %v690 = vpop.f32.mrf.mxu0
        %v691 = vadd.f32 0.0, %v690
        %v692 = vpop.f32.mrf.mxu0
        %v693 = vadd.f32 0.0, %v692
        %v694 = vpop.f32.mrf.mxu0
        %v695 = vadd.f32 0.0, %v694
        %v696 = vpop.f32.mrf.mxu0
        %v697 = vadd.f32 0.0, %v696
        %698 = vmatprep.mubr.bf16.mxu0 0
        %699 = vmatmul.mubr.bf16.gmra.mxu0 %v473
        %v700 = vpop.f32.mrf.mxu0
        %v701 = vadd.f32 0.0, %v700
        %v702 = vpop.f32.mrf.mxu0
        %v703 = vadd.f32 0.0, %v702
        %v704 = vpop.f32.mrf.mxu0
        %v705 = vadd.f32 0.0, %v704
        %v706 = vpop.f32.mrf.mxu0
        %v707 = vadd.f32 0.0, %v706
        %708 = vmatprep.mubr.bf16.mxu0 0
        %709 = vmatmul.mubr.bf16.gmra.mxu0 %v474
        %v710 = vpop.f32.mrf.mxu0
        %v711 = vadd.f32 0.0, %v710
        %v712 = vpop.f32.mrf.mxu0
        %v713 = vadd.f32 0.0, %v712
        %v714 = vpop.f32.mrf.mxu0
        %v715 = vadd.f32 0.0, %v714
        %v716 = vpop.f32.mrf.mxu0
        %v717 = vadd.f32 0.0, %v716
        %718 = vmatprep.mubr.bf16.mxu0 0
        %719 = vmatmul.mubr.bf16.gmra.mxu0 %v475
        %v720 = vpop.f32.mrf.mxu0
        %v721 = vadd.f32 0.0, %v720
        %v722 = vpop.f32.mrf.mxu0
        %v723 = vadd.f32 0.0, %v722
        %v724 = vpop.f32.mrf.mxu0
        %v725 = vadd.f32 0.0, %v724
        %v726 = vpop.f32.mrf.mxu0
        %v727 = vadd.f32 0.0, %v726
        %728 = vmatprep.mubr.bf16.mxu0 0
        %729 = vmatmul.mubr.bf16.gmra.mxu0 %v476
        %v730 = vpop.f32.mrf.mxu0
        %v731 = vadd.f32 0.0, %v730
        %v732 = vpop.f32.mrf.mxu0
        %v733 = vadd.f32 0.0, %v732
        %v734 = vpop.f32.mrf.mxu0
        %v735 = vadd.f32 0.0, %v734
        %v736 = vpop.f32.mrf.mxu0
        %v737 = vadd.f32 0.0, %v736
        %738 = vmatprep.mubr.bf16.mxu0 0
        %739 = vmatmul.mubr.bf16.gmra.mxu0 %v477
        %v740 = vpop.f32.mrf.mxu0
        %v741 = vadd.f32 0.0, %v740
        %v742 = vpop.f32.mrf.mxu0
        %v743 = vadd.f32 0.0, %v742
        %v744 = vpop.f32.mrf.mxu0
        %v745 = vadd.f32 0.0, %v744
        %v746 = vpop.f32.mrf.mxu0
        %v747 = vadd.f32 0.0, %v746
        %748 = vmatprep.mubr.bf16.mxu0 0
        %749 = vmatmul.mubr.bf16.gmra.mxu0 %v478
        %v750 = vpop.f32.mrf.mxu0
        %v751 = vadd.f32 0.0, %v750
        %v752 = vpop.f32.mrf.mxu0
        %v753 = vadd.f32 0.0, %v752
        %v754 = vpop.f32.mrf.mxu0
        %v755 = vadd.f32 0.0, %v754
        %v756 = vpop.f32.mrf.mxu0
        %v757 = vadd.f32 0.0, %v756
        %758 = vmatprep.mubr.bf16.mxu0 0
        %759 = vmatmul.mubr.bf16.gmra.mxu0 %v479
        %v760 = vpop.f32.mrf.mxu0
        %v761 = vadd.f32 0.0, %v760
        %v762 = vpop.f32.mrf.mxu0
        %v763 = vadd.f32 0.0, %v762
        %v764 = vpop.f32.mrf.mxu0
        %v765 = vadd.f32 0.0, %v764
        %v766 = vpop.f32.mrf.mxu0
        %v767 = vadd.f32 0.0, %v766
        %768 = vdwg.mxu0
        %v769 = vadd.f32 %v288, %v611
        %v770 = vadd.f32 %v289, %v613
        %v771 = vadd.f32 %v290, %v615
        %v772 = vadd.f32 %v291, %v617
        %v773 = vadd.f32 %v292, %v621
        %v774 = vadd.f32 %v293, %v623
        %v775 = vadd.f32 %v294, %v625
        %v776 = vadd.f32 %v295, %v627
        %v777 = vadd.f32 %v296, %v631
        %v778 = vadd.f32 %v297, %v633
        %v779 = vadd.f32 %v298, %v635
        %v780 = vadd.f32 %v299, %v637
        %v781 = vadd.f32 %v300, %v641
        %v782 = vadd.f32 %v301, %v643
        %v783 = vadd.f32 %v302, %v645
        %v784 = vadd.f32 %v303, %v647
        %v785 = vadd.f32 %v304, %v651
        %v786 = vadd.f32 %v305, %v653
        %v787 = vadd.f32 %v306, %v655
        %v788 = vadd.f32 %v307, %v657
        %v789 = vadd.f32 %v308, %v661
        %v790 = vadd.f32 %v309, %v663
        %v791 = vadd.f32 %v310, %v665
        %v792 = vadd.f32 %v311, %v667
        %v793 = vadd.f32 %v312, %v671
        %v794 = vadd.f32 %v313, %v673
        %v795 = vadd.f32 %v314, %v675
        %v796 = vadd.f32 %v315, %v677
        %v797 = vadd.f32 %v316, %v681
        %v798 = vadd.f32 %v317, %v683
        %v799 = vadd.f32 %v318, %v685
        %v800 = vadd.f32 %v319, %v687
        %v801 = vadd.f32 %v320, %v691
        %v802 = vadd.f32 %v321, %v693
        %v803 = vadd.f32 %v322, %v695
        %v804 = vadd.f32 %v323, %v697
        %v805 = vadd.f32 %v324, %v701
        %v806 = vadd.f32 %v325, %v703
        %v807 = vadd.f32 %v326, %v705
        %v808 = vadd.f32 %v327, %v707
        %v809 = vadd.f32 %v328, %v711
        %v810 = vadd.f32 %v329, %v713
        %v811 = vadd.f32 %v330, %v715
        %v812 = vadd.f32 %v331, %v717
        %v813 = vadd.f32 %v332, %v721
        %v814 = vadd.f32 %v333, %v723
        %v815 = vadd.f32 %v334, %v725
        %v816 = vadd.f32 %v335, %v727
        %v817 = vadd.f32 %v336, %v731
        %v818 = vadd.f32 %v337, %v733
        %v819 = vadd.f32 %v338, %v735
        %v820 = vadd.f32 %v339, %v737
        %v821 = vadd.f32 %v340, %v741
        %v822 = vadd.f32 %v341, %v743
        %v823 = vadd.f32 %v342, %v745
        %v824 = vadd.f32 %v343, %v747
        %v825 = vadd.f32 %v344, %v751
        %v826 = vadd.f32 %v345, %v753
        %v827 = vadd.f32 %v346, %v755
        %v828 = vadd.f32 %v347, %v757
        %v829 = vadd.f32 %v348, %v761
        %v830 = vadd.f32 %v349, %v763
        %v831 = vadd.f32 %v350, %v765
        %v832 = vadd.f32 %v351, %v767
        %833 = vst [vmem:[#allocation2] sm:$0xff] %v769
        %834 = vst [vmem:[#allocation2 + $0x8] sm:$0xff] %v770
        %835 = vst [vmem:[#allocation2 + $0x10] sm:$0xff] %v771
        %836 = vst [vmem:[#allocation2 + $0x18] sm:$0xff] %v772
        %837 = vst [vmem:[#allocation2 + $0x20] sm:$0xff] %v773
        %838 = vst [vmem:[#allocation2 + $0x28] sm:$0xff] %v774
        %839 = vst [vmem:[#allocation2 + $0x30] sm:$0xff] %v775
        %840 = vst [vmem:[#allocation2 + $0x38] sm:$0xff] %v776
        %841 = vst [vmem:[#allocation2 + $0x40] sm:$0xff] %v777
        %842 = vst [vmem:[#allocation2 + $0x48] sm:$0xff] %v778
        %843 = vst [vmem:[#allocation2 + $0x50] sm:$0xff] %v779
        %844 = vst [vmem:[#allocation2 + $0x58] sm:$0xff] %v780
        %845 = vst [vmem:[#allocation2 + $0x60] sm:$0xff] %v781
        %846 = vst [vmem:[#allocation2 + $0x68] sm:$0xff] %v782
        %847 = vst [vmem:[#allocation2 + $0x70] sm:$0xff] %v783
        %848 = vst [vmem:[#allocation2 + $0x78] sm:$0xff] %v784
        %849 = vst [vmem:[#allocation2 + $0x80] sm:$0xff] %v785
        %850 = vst [vmem:[#allocation2 + $0x88] sm:$0xff] %v786
        %851 = vst [vmem:[#allocation2 + $0x90] sm:$0xff] %v787
        %852 = vst [vmem:[#allocation2 + $0x98] sm:$0xff] %v788
        %853 = vst [vmem:[#allocation2 + $0xa0] sm:$0xff] %v789
        %854 = vst [vmem:[#allocation2 + $0xa8] sm:$0xff] %v790
        %855 = vst [vmem:[#allocation2 + $0xb0] sm:$0xff] %v791
        %856 = vst [vmem:[#allocation2 + $0xb8] sm:$0xff] %v792
        %857 = vst [vmem:[#allocation2 + $0xc0] sm:$0xff] %v793
        %858 = vst [vmem:[#allocation2 + $0xc8] sm:$0xff] %v794
        %859 = vst [vmem:[#allocation2 + $0xd0] sm:$0xff] %v795
        %860 = vst [vmem:[#allocation2 + $0xd8] sm:$0xff] %v796
        %861 = vst [vmem:[#allocation2 + $0xe0] sm:$0xff] %v797
        %862 = vst [vmem:[#allocation2 + $0xe8] sm:$0xff] %v798
        %863 = vst [vmem:[#allocation2 + $0xf0] sm:$0xff] %v799
        %864 = vst [vmem:[#allocation2 + $0xf8] sm:$0xff] %v800
        %865 = vst [vmem:[#allocation2 + $0x100] sm:$0xff] %v801
        %866 = vst [vmem:[#allocation2 + $0x108] sm:$0xff] %v802
        %867 = vst [vmem:[#allocation2 + $0x110] sm:$0xff] %v803
        %868 = vst [vmem:[#allocation2 + $0x118] sm:$0xff] %v804
        %869 = vst [vmem:[#allocation2 + $0x120] sm:$0xff] %v805
        %870 = vst [vmem:[#allocation2 + $0x128] sm:$0xff] %v806
        %871 = vst [vmem:[#allocation2 + $0x130] sm:$0xff] %v807
        %872 = vst [vmem:[#allocation2 + $0x138] sm:$0xff] %v808
        %873 = vst [vmem:[#allocation2 + $0x140] sm:$0xff] %v809
        %874 = vst [vmem:[#allocation2 + $0x148] sm:$0xff] %v810
        %875 = vst [vmem:[#allocation2 + $0x150] sm:$0xff] %v811
        %876 = vst [vmem:[#allocation2 + $0x158] sm:$0xff] %v812
        %877 = vst [vmem:[#allocation2 + $0x160] sm:$0xff] %v813
        %878 = vst [vmem:[#allocation2 + $0x168] sm:$0xff] %v814
        %879 = vst [vmem:[#allocation2 + $0x170] sm:$0xff] %v815
        %880 = vst [vmem:[#allocation2 + $0x178] sm:$0xff] %v816
        %881 = vst [vmem:[#allocation2 + $0x180] sm:$0xff] %v817
        %882 = vst [vmem:[#allocation2 + $0x188] sm:$0xff] %v818
        %883 = vst [vmem:[#allocation2 + $0x190] sm:$0xff] %v819
        %884 = vst [vmem:[#allocation2 + $0x198] sm:$0xff] %v820
        %885 = vst [vmem:[#allocation2 + $0x1a0] sm:$0xff] %v821
        %886 = vst [vmem:[#allocation2 + $0x1a8] sm:$0xff] %v822
        %887 = vst [vmem:[#allocation2 + $0x1b0] sm:$0xff] %v823
        %888 = vst [vmem:[#allocation2 + $0x1b8] sm:$0xff] %v824
        %889 = vst [vmem:[#allocation2 + $0x1c0] sm:$0xff] %v825
        %890 = vst [vmem:[#allocation2 + $0x1c8] sm:$0xff] %v826
        %891 = vst [vmem:[#allocation2 + $0x1d0] sm:$0xff] %v827
        %892 = vst [vmem:[#allocation2 + $0x1d8] sm:$0xff] %v828
        %893 = vst [vmem:[#allocation2 + $0x1e0] sm:$0xff] %v829
        %894 = vst [vmem:[#allocation2 + $0x1e8] sm:$0xff] %v830
        %895 = vst [vmem:[#allocation2 + $0x1f0] sm:$0xff] %v831
        %896 = vst [vmem:[#allocation2 + $0x1f8] sm:$0xff] %v832
        // Predicated region
        $region41: #{tpu_custom_call.1} parent=27 // pred_check
          %p897 = pneg %p220
        $region42: #{tpu_custom_call.1} parent=27 // pred_check_branch
          %899 = sbr.rel (%p897) target = $region44
        $region43: #{tpu_custom_call.1} parent=27 // pred_region
          %v900 = vld [vmem:[#allocation2] sm:$0xff]
          %v901 = vld [vmem:[#allocation2 + $0x8] sm:$0xff]
          %v902 = vld [vmem:[#allocation2 + $0x10] sm:$0xff]
          %v903 = vld [vmem:[#allocation2 + $0x18] sm:$0xff]
          %v904 = vld [vmem:[#allocation2 + $0x20] sm:$0xff]
          %v905 = vld [vmem:[#allocation2 + $0x28] sm:$0xff]
          %v906 = vld [vmem:[#allocation2 + $0x30] sm:$0xff]
          %v907 = vld [vmem:[#allocation2 + $0x38] sm:$0xff]
          %v908 = vld [vmem:[#allocation2 + $0x40] sm:$0xff]
          %v909 = vld [vmem:[#allocation2 + $0x48] sm:$0xff]
          %v910 = vld [vmem:[#allocation2 + $0x50] sm:$0xff]
          %v911 = vld [vmem:[#allocation2 + $0x58] sm:$0xff]
          %v912 = vld [vmem:[#allocation2 + $0x60] sm:$0xff]
          %v913 = vld [vmem:[#allocation2 + $0x68] sm:$0xff]
          %v914 = vld [vmem:[#allocation2 + $0x70] sm:$0xff]
          %v915 = vld [vmem:[#allocation2 + $0x78] sm:$0xff]
          %v916 = vld [vmem:[#allocation2 + $0x80] sm:$0xff]
          %v917 = vld [vmem:[#allocation2 + $0x88] sm:$0xff]
          %v918 = vld [vmem:[#allocation2 + $0x90] sm:$0xff]
          %v919 = vld [vmem:[#allocation2 + $0x98] sm:$0xff]
          %v920 = vld [vmem:[#allocation2 + $0xa0] sm:$0xff]
          %v921 = vld [vmem:[#allocation2 + $0xa8] sm:$0xff]
          %v922 = vld [vmem:[#allocation2 + $0xb0] sm:$0xff]
          %v923 = vld [vmem:[#allocation2 + $0xb8] sm:$0xff]
          %v924 = vld [vmem:[#allocation2 + $0xc0] sm:$0xff]
          %v925 = vld [vmem:[#allocation2 + $0xc8] sm:$0xff]
          %v926 = vld [vmem:[#allocation2 + $0xd0] sm:$0xff]
          %v927 = vld [vmem:[#allocation2 + $0xd8] sm:$0xff]
          %v928 = vld [vmem:[#allocation2 + $0xe0] sm:$0xff]
          %v929 = vld [vmem:[#allocation2 + $0xe8] sm:$0xff]
          %v930 = vld [vmem:[#allocation2 + $0xf0] sm:$0xff]
          %v931 = vld [vmem:[#allocation2 + $0xf8] sm:$0xff]
          %v932 = vld [vmem:[#allocation2 + $0x100] sm:$0xff]
          %v933 = vld [vmem:[#allocation2 + $0x108] sm:$0xff]
          %v934 = vld [vmem:[#allocation2 + $0x110] sm:$0xff]
          %v935 = vld [vmem:[#allocation2 + $0x118] sm:$0xff]
          %v936 = vld [vmem:[#allocation2 + $0x120] sm:$0xff]
          %v937 = vld [vmem:[#allocation2 + $0x128] sm:$0xff]
          %v938 = vld [vmem:[#allocation2 + $0x130] sm:$0xff]
          %v939 = vld [vmem:[#allocation2 + $0x138] sm:$0xff]
          %v940 = vld [vmem:[#allocation2 + $0x140] sm:$0xff]
          %v941 = vld [vmem:[#allocation2 + $0x148] sm:$0xff]
          %v942 = vld [vmem:[#allocation2 + $0x150] sm:$0xff]
          %v943 = vld [vmem:[#allocation2 + $0x158] sm:$0xff]
          %v944 = vld [vmem:[#allocation2 + $0x160] sm:$0xff]
          %v945 = vld [vmem:[#allocation2 + $0x168] sm:$0xff]
          %v946 = vld [vmem:[#allocation2 + $0x170] sm:$0xff]
          %v947 = vld [vmem:[#allocation2 + $0x178] sm:$0xff]
          %v948 = vld [vmem:[#allocation2 + $0x180] sm:$0xff]
          %v949 = vld [vmem:[#allocation2 + $0x188] sm:$0xff]
          %v950 = vld [vmem:[#allocation2 + $0x190] sm:$0xff]
          %v951 = vld [vmem:[#allocation2 + $0x198] sm:$0xff]
          %v952 = vld [vmem:[#allocation2 + $0x1a0] sm:$0xff]
          %v953 = vld [vmem:[#allocation2 + $0x1a8] sm:$0xff]
          %v954 = vld [vmem:[#allocation2 + $0x1b0] sm:$0xff]
          %v955 = vld [vmem:[#allocation2 + $0x1b8] sm:$0xff]
          %v956 = vld [vmem:[#allocation2 + $0x1c0] sm:$0xff]
          %v957 = vld [vmem:[#allocation2 + $0x1c8] sm:$0xff]
          %v958 = vld [vmem:[#allocation2 + $0x1d0] sm:$0xff]
          %v959 = vld [vmem:[#allocation2 + $0x1d8] sm:$0xff]
          %v960 = vld [vmem:[#allocation2 + $0x1e0] sm:$0xff]
          %v961 = vld [vmem:[#allocation2 + $0x1e8] sm:$0xff]
          %v962 = vld [vmem:[#allocation2 + $0x1f0] sm:$0xff]
          %v963 = vld [vmem:[#allocation2 + $0x1f8] sm:$0xff]
          %v964 = vpack.c.bf16 %v902, %v900
          %v965 = vpack.c.bf16 %v903, %v901
          %v966 = vpack.c.bf16 %v906, %v904
          %v967 = vpack.c.bf16 %v907, %v905
          %v968 = vpack.c.bf16 %v910, %v908
          %v969 = vpack.c.bf16 %v911, %v909
          %v970 = vpack.c.bf16 %v914, %v912
          %v971 = vpack.c.bf16 %v915, %v913
          %v972 = vpack.c.bf16 %v918, %v916
          %v973 = vpack.c.bf16 %v919, %v917
          %v974 = vpack.c.bf16 %v922, %v920
          %v975 = vpack.c.bf16 %v923, %v921
          %v976 = vpack.c.bf16 %v926, %v924
          %v977 = vpack.c.bf16 %v927, %v925
          %v978 = vpack.c.bf16 %v930, %v928
          %v979 = vpack.c.bf16 %v931, %v929
          %v980 = vpack.c.bf16 %v934, %v932
          %v981 = vpack.c.bf16 %v935, %v933
          %v982 = vpack.c.bf16 %v938, %v936
          %v983 = vpack.c.bf16 %v939, %v937
          %v984 = vpack.c.bf16 %v942, %v940
          %v985 = vpack.c.bf16 %v943, %v941
          %v986 = vpack.c.bf16 %v946, %v944
          %v987 = vpack.c.bf16 %v947, %v945
          %v988 = vpack.c.bf16 %v950, %v948
          %v989 = vpack.c.bf16 %v951, %v949
          %v990 = vpack.c.bf16 %v954, %v952
          %v991 = vpack.c.bf16 %v955, %v953
          %v992 = vpack.c.bf16 %v958, %v956
          %v993 = vpack.c.bf16 %v959, %v957
          %v994 = vpack.c.bf16 %v962, %v960
          %v995 = vpack.c.bf16 %v963, %v961
          %v1028 = vunpack.c.l.b16 %v964
          %v1029 = vunpack.c.l.b16 %v965
          %v1030 = vunpack.c.h.b16 %v964
          %v1031 = vunpack.c.h.b16 %v965
          %v1032 = vunpack.c.l.b16 %v966
          %v1033 = vunpack.c.l.b16 %v967
          %v1034 = vunpack.c.h.b16 %v966
          %v1035 = vunpack.c.h.b16 %v967
          %v1036 = vunpack.c.l.b16 %v968
          %v1037 = vunpack.c.l.b16 %v969
          %v1038 = vunpack.c.h.b16 %v968
          %v1039 = vunpack.c.h.b16 %v969
          %v1040 = vunpack.c.l.b16 %v970
          %v1041 = vunpack.c.l.b16 %v971
          %v1042 = vunpack.c.h.b16 %v970
          %v1043 = vunpack.c.h.b16 %v971
          %v1044 = vunpack.c.l.b16 %v972
          %v1045 = vunpack.c.l.b16 %v973
          %v1046 = vunpack.c.h.b16 %v972
          %v1047 = vunpack.c.h.b16 %v973
          %v1048 = vunpack.c.l.b16 %v974
          %v1049 = vunpack.c.l.b16 %v975
          %v1050 = vunpack.c.h.b16 %v974
          %v1051 = vunpack.c.h.b16 %v975
          %v1052 = vunpack.c.l.b16 %v976
          %v1053 = vunpack.c.l.b16 %v977
          %v1054 = vunpack.c.h.b16 %v976
          %v1055 = vunpack.c.h.b16 %v977
          %v1056 = vunpack.c.l.b16 %v978
          %v1057 = vunpack.c.l.b16 %v979
          %v1058 = vunpack.c.h.b16 %v978
          %v1059 = vunpack.c.h.b16 %v979
          %v1060 = vunpack.c.l.b16 %v980
          %v1061 = vunpack.c.l.b16 %v981
          %v1062 = vunpack.c.h.b16 %v980
          %v1063 = vunpack.c.h.b16 %v981
          %v1064 = vunpack.c.l.b16 %v982
          %v1065 = vunpack.c.l.b16 %v983
          %v1066 = vunpack.c.h.b16 %v982
          %v1067 = vunpack.c.h.b16 %v983
          %v1068 = vunpack.c.l.b16 %v984
          %v1069 = vunpack.c.l.b16 %v985
          %v1070 = vunpack.c.h.b16 %v984
          %v1071 = vunpack.c.h.b16 %v985
          %v1072 = vunpack.c.l.b16 %v986
          %v1073 = vunpack.c.l.b16 %v987
          %v1074 = vunpack.c.h.b16 %v986
          %v1075 = vunpack.c.h.b16 %v987
          %v1076 = vunpack.c.l.b16 %v988
          %v1077 = vunpack.c.l.b16 %v989
          %v1078 = vunpack.c.h.b16 %v988
          %v1079 = vunpack.c.h.b16 %v989
          %v1080 = vunpack.c.l.b16 %v990
          %v1081 = vunpack.c.l.b16 %v991
          %v1082 = vunpack.c.h.b16 %v990
          %v1083 = vunpack.c.h.b16 %v991
          %v1084 = vunpack.c.l.b16 %v992
          %v1085 = vunpack.c.l.b16 %v993
          %v1086 = vunpack.c.h.b16 %v992
          %v1087 = vunpack.c.h.b16 %v993
          %v1088 = vunpack.c.l.b16 %v994
          %v1089 = vunpack.c.l.b16 %v995
          %v1090 = vunpack.c.h.b16 %v994
          %v1091 = vunpack.c.h.b16 %v995
          %v1092 = vpack.c.b16 %v1029, %v1028
          %v1093 = vpack.c.b16 %v1031, %v1030
          %v1094 = vpack.c.b16 %v1033, %v1032
          %v1095 = vpack.c.b16 %v1035, %v1034
          %v1096 = vpack.c.b16 %v1037, %v1036
          %v1097 = vpack.c.b16 %v1039, %v1038
          %v1098 = vpack.c.b16 %v1041, %v1040
          %v1099 = vpack.c.b16 %v1043, %v1042
          %v1100 = vpack.c.b16 %v1045, %v1044
          %v1101 = vpack.c.b16 %v1047, %v1046
          %v1102 = vpack.c.b16 %v1049, %v1048
          %v1103 = vpack.c.b16 %v1051, %v1050
          %v1104 = vpack.c.b16 %v1053, %v1052
          %v1105 = vpack.c.b16 %v1055, %v1054
          %v1106 = vpack.c.b16 %v1057, %v1056
          %v1107 = vpack.c.b16 %v1059, %v1058
          %v1108 = vpack.c.b16 %v1061, %v1060
          %v1109 = vpack.c.b16 %v1063, %v1062
          %v1110 = vpack.c.b16 %v1065, %v1064
          %v1111 = vpack.c.b16 %v1067, %v1066
          %v1112 = vpack.c.b16 %v1069, %v1068
          %v1113 = vpack.c.b16 %v1071, %v1070
          %v1114 = vpack.c.b16 %v1073, %v1072
          %v1115 = vpack.c.b16 %v1075, %v1074
          %v1116 = vpack.c.b16 %v1077, %v1076
          %v1117 = vpack.c.b16 %v1079, %v1078
          %v1118 = vpack.c.b16 %v1081, %v1080
          %v1119 = vpack.c.b16 %v1083, %v1082
          %v1120 = vpack.c.b16 %v1085, %v1084
          %v1121 = vpack.c.b16 %v1087, %v1086
          %v1122 = vpack.c.b16 %v1089, %v1088
          %v1123 = vpack.c.b16 %v1091, %v1090
          %1156 = vst [vmem:[%s213] sm:$0xff] %v1092
          %1157 = vst [vmem:[%s213 + $0x8] sm:$0xff] %v1093
          %1158 = vst [vmem:[%s213 + $0x10] sm:$0xff] %v1094
          %1159 = vst [vmem:[%s213 + $0x18] sm:$0xff] %v1095
          %1160 = vst [vmem:[%s213 + $0x20] sm:$0xff] %v1096
          %1161 = vst [vmem:[%s213 + $0x28] sm:$0xff] %v1097
          %1162 = vst [vmem:[%s213 + $0x30] sm:$0xff] %v1098
          %1163 = vst [vmem:[%s213 + $0x38] sm:$0xff] %v1099
          %1164 = vst [vmem:[%s213 + $0x40] sm:$0xff] %v1100
          %1165 = vst [vmem:[%s213 + $0x48] sm:$0xff] %v1101
          %1166 = vst [vmem:[%s213 + $0x50] sm:$0xff] %v1102
          %1167 = vst [vmem:[%s213 + $0x58] sm:$0xff] %v1103
          %1168 = vst [vmem:[%s213 + $0x60] sm:$0xff] %v1104
          %1169 = vst [vmem:[%s213 + $0x68] sm:$0xff] %v1105
          %1170 = vst [vmem:[%s213 + $0x70] sm:$0xff] %v1106
          %1171 = vst [vmem:[%s213 + $0x78] sm:$0xff] %v1107
          %1172 = vst [vmem:[%s213 + $0x80] sm:$0xff] %v1108
          %1173 = vst [vmem:[%s213 + $0x88] sm:$0xff] %v1109
          %1174 = vst [vmem:[%s213 + $0x90] sm:$0xff] %v1110
          %1175 = vst [vmem:[%s213 + $0x98] sm:$0xff] %v1111
          %1176 = vst [vmem:[%s213 + $0xa0] sm:$0xff] %v1112
          %1177 = vst [vmem:[%s213 + $0xa8] sm:$0xff] %v1113
          %1178 = vst [vmem:[%s213 + $0xb0] sm:$0xff] %v1114
          %1179 = vst [vmem:[%s213 + $0xb8] sm:$0xff] %v1115
          %1180 = vst [vmem:[%s213 + $0xc0] sm:$0xff] %v1116
          %1181 = vst [vmem:[%s213 + $0xc8] sm:$0xff] %v1117
          %1182 = vst [vmem:[%s213 + $0xd0] sm:$0xff] %v1118
          %1183 = vst [vmem:[%s213 + $0xd8] sm:$0xff] %v1119
          %1184 = vst [vmem:[%s213 + $0xe0] sm:$0xff] %v1120
          %1185 = vst [vmem:[%s213 + $0xe8] sm:$0xff] %v1121
          %1186 = vst [vmem:[%s213 + $0xf0] sm:$0xff] %v1122
          %1187 = vst [vmem:[%s213 + $0xf8] sm:$0xff] %v1123
        $region44: #{tpu_custom_call.1} parent=27 // pred_fallthru
          _
        %s1188 = sand.u32 %s105, 1
        %s1189 = scalar_lea.sflag [#allocation5], %s1188
        %s1190 = sand.u32 %s105, 1
        %s1191 = smul.addr %s1190, 256
        %s1192 = scalar_lea.vmem [#allocation8], %s1191
        // Predicated region
        $region45: #{tpu_custom_call.1} parent=27 // pred_check
          %p1193 = pneg %p115
        $region46: #{tpu_custom_call.1} parent=27 // pred_check_branch
          %1195 = sbr.rel (%p1193) target = $region48
        $region47: #{tpu_custom_call.1} parent=27 // pred_region
          %s1196 = smul.u32 32, %s25
          %s1197 = smul.u32 2, %s26
          %s1199 = ssub.s32 4096, 4096
          %1200 = vsyncadd %s1189, %s1199
          %s1201 = smul.addr %s1196, 12
          %s1202 = sadd.s32 %s1197, %s1201
          %s1203 = smul.addr %s1202, 64
          %s1204 = scalar_lea.hbm %s2, %s1203
          %s1205 = sshll.u32 %s1192, 4
          %s1206 = int_to_ptr.vmem [resolvable:$true] %s1205
          %1211 = dma.vmem_to_hbm [thread:$0]  %s1206, 4096, %s1204, %s1189, 128, 768, 8
        $region48: #{tpu_custom_call.1} parent=27 // pred_fallthru
          _
      $region28: #{tpu_custom_call.1} parent=5 // pred_fallthru
        _
      %p1212 = scmp.le.s32.totalorder 2, %s15
      // Predicated region
      $region49: #{tpu_custom_call.1} parent=5 // pred_check
        %p1213 = pneg %p1212
      $region50: #{tpu_custom_call.1} parent=5 // pred_check_branch
        %1215 = sbr.rel (%p1213) target = $region52
      $region51: #{tpu_custom_call.1} parent=5 // pred_region
        %s1216 = ssub.s32 %s15, 2
        // Predicated region
        $region53: #{tpu_custom_call.1} parent=51 // pred_check
          %p1217 = pneg %p121
        $region54: #{tpu_custom_call.1} parent=51 // pred_check_branch
          %1219 = sbr.rel (%p1217) target = $region56
        $region55: #{tpu_custom_call.1} parent=51 // pred_region
          %s1220 = sand.u32 %s106, 1
          %s1221 = scalar_lea.sflag [#allocation5], %s1220
          %s1222 = sand.u32 %s106, 1
          %s1223 = smul.addr %s1222, 256
          %s1224 = scalar_lea.vmem [#allocation8], %s1223
          %1225 = dma.done %s1221, 4096
        $region56: #{tpu_custom_call.1} parent=51 // pred_fallthru
          _
      $region52: #{tpu_custom_call.1} parent=5 // pred_fallthru
        _
    $region6: #{tpu_custom_call.1} parent=1 // loop_footer
      %s19 = sadd.s32 1, %s15
    $region7: #{tpu_custom_call.1} parent=1 // loop_footer_branch
      %14 = sbr.rel target = $region3
    $region8: #{tpu_custom_call.1} parent=1 // loop_exit
      _
    %1226 = vsyncpa [#allocation4], 1
    %s1227 = scalar_lea.sflag [#allocation4], 1
    %1228 = vsyncpa %s1227, 1
    %1229 = vsyncpa [#allocation7], 1
    %s1230 = scalar_lea.sflag [#allocation7], 1
    %1231 = vsyncpa %s1230, 1
    %1232 = vsyncpa [#allocation5], 1
    %s1233 = scalar_lea.sflag [#allocation5], 1
    %1234 = vsyncpa %s1233, 1

</llo_original>
